<compile_context>
chip_gen: v6e
topology: v6e:2x2x1
jax: 0.10.0
libtpu: 0.0.40
codegen_flags: <defaults>
</compile_context>

<pallas_src>
import functools

import jax
import jax.numpy as jnp
from jax import lax
from jax.experimental import pallas as pl
from jax.experimental.pallas import tpu as pltpu


def _rdrop_kernel(kl_w_ref, l1_ref, l2_ref, tgt_ref, out_ref, *,
                  inv_2b, b_total, needs_row_mask):
    i = pl.program_id(0)

    l1 = l1_ref[...].astype(jnp.float32)          # (TB, C)
    l2 = l2_ref[...].astype(jnp.float32)          # (TB, C)
    tgt = tgt_ref[...]                            # (TB, 1) int32
    tb, c = l1.shape

    row_valid = None
    if needs_row_mask:
        # Only the last tile can extend past B: neutralize garbage rows BEFORE
        # exp (select, not multiply) so Inf/NaN cannot leak into reductions.
        row_ids = i * tb + lax.broadcasted_iota(jnp.int32, (tb, 1), 0)
        row_valid = row_ids < b_total             # (TB, 1) bool
        l1 = jnp.where(row_valid, l1, 0.0)
        l2 = jnp.where(row_valid, l2, 0.0)
        tgt = jnp.where(row_valid, tgt, -1)

    # Numerically stable softmax pieces; exp(l - m) reused for probabilities
    # (only 2 full-tile exp passes total).
    m1 = jnp.max(l1, axis=-1, keepdims=True)
    m2 = jnp.max(l2, axis=-1, keepdims=True)
    e1 = jnp.exp(l1 - m1)
    e2 = jnp.exp(l2 - m2)
    s1 = jnp.sum(e1, axis=-1, keepdims=True)
    s2 = jnp.sum(e2, axis=-1, keepdims=True)
    lse1 = jnp.log(s1)
    lse2 = jnp.log(s2)

    # Symmetric KL folded: sum((p2 - p1) * (log p2 - log p1)).
    # log p2 - log p1 = (l2 - l1) - per-row term, so z1/z2 are never
    # materialized outside the exp.
    p_diff = e2 * (1.0 / s2) - e1 * (1.0 / s1)
    log_diff = (l2 - l1) - ((m2 - m1) + (lse2 - lse1))
    kl_sum = jnp.sum(p_diff * log_diff)

    # Cross entropy for both passes:
    #   ce_sum = sum_valid(m1 + m2 + lse1 + lse2) - sum(l1[t] + l2[t]).
    col = lax.broadcasted_iota(jnp.int32, (tb, c), 1)
    hit = col == tgt                              # exactly one True per valid row
    ce_rows = m1 + m2 + lse1 + lse2               # (TB, 1)
    if needs_row_mask:
        ce_rows = jnp.where(row_valid, ce_rows, 0.0)
    ce_sum = jnp.sum(ce_rows) - jnp.sum(jnp.where(hit, l1 + l2, 0.0))

    # Per-tile partial contribution; final (tiny) sum happens in the wrapper,
    # which keeps the grid axis free of cross-iteration state (-> "parallel").
    partial = (ce_sum + kl_w_ref[0, 0] * kl_sum) * inv_2b
    out_ref[...] = jnp.full(out_ref.shape, partial, dtype=jnp.float32)


def _pick_tile(B, C, itemsize):
    """Batch tile and VMEM limit sized from total live bytes per grid step."""
    c_lane = ((C + 127) // 128) * 128             # internal lane padding
    try:
        cap = pltpu.get_tpu_info().vmem_capacity_bytes
    except Exception:
        cap = 64 * 1024 * 1024                    # conservative (v7x per-core)
    limit = min(cap // 2, 64 * 1024 * 1024)       # scoped VMEM we request
    budget = int(limit * 0.8)                     # headroom for out bufs / misc
    # 2 inputs x 2 (double buffer) x itemsize + ~6 tile-sized f32 temporaries.
    per_row = c_lane * (4 * itemsize + 6 * 4)
    sub = max(8, 32 // itemsize)                  # packed-sublane multiple
    tb = max(sub, (budget // per_row) // sub * sub)
    tb = min(tb, 4096)
    tb = min(tb, ((B + sub - 1) // sub) * sub)    # never larger than needed
    vmem_limit = max(limit, tb * per_row + (4 << 20))
    return tb, int(vmem_limit)


def rdrop_loss(logits1, logits2, target, kl_weight=0.0):
    """logits1, logits2: (B, C) float; target: (B,) int. Returns scalar float32."""
    B, C = logits1.shape
    assert logits2.shape == (B, C)

    itemsize = jnp.dtype(logits1.dtype).itemsize
    tb, vmem_limit = _pick_tile(B, C, itemsize)
    n_tiles = (B + tb - 1) // tb
    needs_row_mask = (B % tb) != 0

    tgt = target.astype(jnp.int32).reshape(B, 1)
    kl_w = jnp.asarray(kl_weight, jnp.float32).reshape(1, 1)

    kernel = functools.partial(
        _rdrop_kernel,
        inv_2b=float(1.0 / (2.0 * B)),
        b_total=B,
        needs_row_mask=needs_row_mask,
    )
    cost = pl.CostEstimate(
        flops=int(16 * B * C),
        transcendentals=int(2 * B * C + 4 * B),
        bytes_accessed=int(2 * B * C * itemsize + 4 * B
                           + n_tiles * 8 * 128 * 4 + 8),
    )

    partials = pl.pallas_call(
        kernel,
        out_shape=jax.ShapeDtypeStruct((n_tiles, 8, 128), jnp.float32),
        grid=(n_tiles,),
        in_specs=[
            pl.BlockSpec(memory_space=pltpu.SMEM),         # kl_weight (1,1) scalar
            pl.BlockSpec((tb, C), lambda i: (i, 0)),       # logits1 tile (full C)
            pl.BlockSpec((tb, C), lambda i: (i, 0)),       # logits2 tile (full C)
            pl.BlockSpec((tb, 1), lambda i: (i, 0)),       # target indices tile
        ],
        out_specs=pl.BlockSpec((1, 8, 128), lambda i: (i, 0, 0)),  # per-tile partial
        compiler_params=pltpu.CompilerParams(
            dimension_semantics=("parallel",),             # lets v7x use both TCs
            vmem_limit_bytes=vmem_limit,
        ),
        cost_estimate=cost,
    )(kl_w, logits1, logits2, tgt)

    return jnp.sum(partials[:, 0, 0])


def _rdrop_reference(logits1, logits2, target, kl_weight=0.0):
    ls1 = jax.nn.log_softmax(logits1.astype(jnp.float32), axis=-1)
    ls2 = jax.nn.log_softmax(logits2.astype(jnp.float32), axis=-1)
    B = logits1.shape[0]
    onehot = jax.nn.one_hot(target, logits1.shape[1], dtype=jnp.float32)
    ce = (-jnp.sum(onehot * ls1) / B - jnp.sum(onehot * ls2) / B) / 2.0
    p2, p1 = jnp.exp(ls2), jnp.exp(ls1)
    p_loss = jnp.sum(p2 * (ls2 - ls1)) / B
    q_loss = jnp.sum(p1 * (ls1 - ls2)) / B
    return ce + kl_weight * (p_loss + q_loss) / 2.0


if __name__ == "__main__":
    key = jax.random.PRNGKey(0)
    k1, k2, k3 = jax.random.split(key, 3)
    B, C = 8, 32                                  # batch size, num classes
    logits1 = jax.random.normal(k1, (B, C), dtype=jnp.float32)
    logits2 = jax.random.normal(k2, (B, C), dtype=jnp.float32)
    target = jax.random.randint(k3, (B,), 0, C, dtype=jnp.int32)
    kl_weight = 0.5

    loss = rdrop_loss(logits1, logits2, target, kl_weight)
    jax.block_until_ready(loss)
    ref = _rdrop_reference(logits1, logits2, target, kl_weight)
    assert jnp.allclose(loss, ref, rtol=1e-5, atol=1e-5), (loss, ref)

    # Ragged case: exercises the partial boundary block (class dim not a
    # multiple of 128, batch not a multiple of the tile) with in-kernel masking.
    k4, k5, k6 = jax.random.split(jax.random.PRNGKey(1), 3)
    B2, C2 = 13, 37
    l1b = jax.random.normal(k4, (B2, C2), dtype=jnp.float32)
    l2b = jax.random.normal(k5, (B2, C2), dtype=jnp.float32)
    t2 = jax.random.randint(k6, (B2,), 0, C2, dtype=jnp.int32)
    loss2 = rdrop_loss(l1b, l2b, t2, 1.0)
    jax.block_until_ready(loss2)
    ref2 = _rdrop_reference(l1b, l2b, t2, 1.0)
    assert jnp.allclose(loss2, ref2, rtol=1e-5, atol=1e-5), (loss2, ref2)

    print("KERNEL_OK")
</pallas_src>

<mosaic_0001>
module attributes {stable_mosaic.version = 11 : i64} {
  func.func @_rdrop_kernel(%arg0: i32, %arg1: memref<1x1xf32, #tpu.memory_space<smem>>, %arg2: memref<8x32xf32, #tpu.memory_space<vmem>>, %arg3: memref<8x32xf32, #tpu.memory_space<vmem>>, %arg4: memref<8x1xi32, #tpu.memory_space<vmem>>, %arg5: memref<1x8x128xf32, #tpu.memory_space<vmem>>) attributes {dimension_semantics = [#tpu.dimension_semantics<parallel>], iteration_bounds = array<i64: 1>, scalar_prefetch = 0 : i64, scratch_operands = 0 : i64, tpu.core_type = #tpu.core_type<tc>, window_params = [{transform_indices = @transform_0, window_bounds = array<i64: 1, 1>}, {transform_indices = @transform_1, window_bounds = array<i64: 8, 32>}, {transform_indices = @transform_2, window_bounds = array<i64: 8, 32>}, {transform_indices = @transform_3, window_bounds = array<i64: 8, 1>}, {transform_indices = @transform_4, window_bounds = array<i64: 1, 8, 128>}]} {
    %c0 = arith.constant 0 : index
    %c0_0 = arith.constant 0 : index
    %0 = vector.load %arg2[%c0, %c0_0] : memref<8x32xf32, #tpu.memory_space<vmem>>, vector<8x32xf32>
    %c0_1 = arith.constant 0 : index
    %c0_2 = arith.constant 0 : index
    %1 = vector.load %arg3[%c0_1, %c0_2] : memref<8x32xf32, #tpu.memory_space<vmem>>, vector<8x32xf32>
    %c0_3 = arith.constant 0 : index
    %c0_4 = arith.constant 0 : index
    %2 = vector.load %arg4[%c0_3, %c0_4] : memref<8x1xi32, #tpu.memory_space<vmem>>, vector<8x1xi32>
    %cst = arith.constant dense<0xFF800000> : vector<8xf32>
    %3 = vector.multi_reduction <maximumf>, %0, %cst [1] : vector<8x32xf32> to vector<8xf32>
    %4 = vector.shape_cast %3 : vector<8xf32> to vector<8x1xf32>
    %cst_5 = arith.constant dense<0xFF800000> : vector<8xf32>
    %5 = vector.multi_reduction <maximumf>, %1, %cst_5 [1] : vector<8x32xf32> to vector<8xf32>
    %6 = vector.shape_cast %5 : vector<8xf32> to vector<8x1xf32>
    %7 = vector.broadcast %4 : vector<8x1xf32> to vector<8x32xf32>
    %8 = arith.subf %0, %7 : vector<8x32xf32>
    %9 = math.exp %8 : vector<8x32xf32>
    %10 = vector.broadcast %6 : vector<8x1xf32> to vector<8x32xf32>
    %11 = arith.subf %1, %10 : vector<8x32xf32>
    %12 = math.exp %11 : vector<8x32xf32>
    %cst_6 = arith.constant dense<0.000000e+00> : vector<8xf32>
    %13 = vector.multi_reduction <add>, %9, %cst_6 [1] : vector<8x32xf32> to vector<8xf32>
    %14 = vector.shape_cast %13 : vector<8xf32> to vector<8x1xf32>
    %cst_7 = arith.constant dense<0.000000e+00> : vector<8xf32>
    %15 = vector.multi_reduction <add>, %12, %cst_7 [1] : vector<8x32xf32> to vector<8xf32>
    %16 = vector.shape_cast %15 : vector<8xf32> to vector<8x1xf32>
    %17 = math.log %14 : vector<8x1xf32>
    %18 = math.log %16 : vector<8x1xf32>
    %cst_8 = arith.constant 1.000000e+00 : f32
    %19 = vector.broadcast %cst_8 : f32 to vector<8x1xf32>
    %20 = arith.divf %19, %16 : vector<8x1xf32>
    %21 = vector.broadcast %20 : vector<8x1xf32> to vector<8x32xf32>
    %22 = arith.mulf %12, %21 : vector<8x32xf32>
    %cst_9 = arith.constant 1.000000e+00 : f32
    %23 = vector.broadcast %cst_9 : f32 to vector<8x1xf32>
    %24 = arith.divf %23, %14 : vector<8x1xf32>
    %25 = vector.broadcast %24 : vector<8x1xf32> to vector<8x32xf32>
    %26 = arith.mulf %9, %25 : vector<8x32xf32>
    %27 = arith.subf %22, %26 : vector<8x32xf32>
    %28 = arith.subf %1, %0 : vector<8x32xf32>
    %29 = arith.subf %6, %4 : vector<8x1xf32>
    %30 = arith.subf %18, %17 : vector<8x1xf32>
    %31 = arith.addf %29, %30 : vector<8x1xf32>
    %32 = vector.broadcast %31 : vector<8x1xf32> to vector<8x32xf32>
    %33 = arith.subf %28, %32 : vector<8x32xf32>
    %34 = arith.mulf %27, %33 : vector<8x32xf32>
    %35 = vector.shape_cast %34 : vector<8x32xf32> to vector<1x8x32xf32>
    %cst_10 = arith.constant dense<0.000000e+00> : vector<1xf32>
    %36 = vector.multi_reduction <add>, %35, %cst_10 [1, 2] : vector<1x8x32xf32> to vector<1xf32>
    %37 = vector.shape_cast %36 : vector<1xf32> to vector<1x1x1xf32>
    %38 = vector.extract %37[0, 0, 0] : f32 from vector<1x1x1xf32>
    %39 = tpu.iota {dimensions = array<i32: 1>} : vector<8x32xi32>
    %40 = vector.broadcast %2 : vector<8x1xi32> to vector<8x32xi32>
    %41 = arith.cmpi eq, %39, %40 : vector<8x32xi32>
    %42 = arith.addf %4, %6 : vector<8x1xf32>
    %43 = arith.addf %42, %17 : vector<8x1xf32>
    %44 = arith.addf %43, %18 : vector<8x1xf32>
    %45 = vector.shape_cast %44 : vector<8x1xf32> to vector<1x8x1xf32>
    %cst_11 = arith.constant dense<0.000000e+00> : vector<1xf32>
    %46 = vector.multi_reduction <add>, %45, %cst_11 [1, 2] : vector<1x8x1xf32> to vector<1xf32>
    %47 = vector.shape_cast %46 : vector<1xf32> to vector<1x1x1xf32>
    %48 = vector.extract %47[0, 0, 0] : f32 from vector<1x1x1xf32>
    %49 = arith.addf %0, %1 : vector<8x32xf32>
    %cst_12 = arith.constant 0.000000e+00 : f32
    %50 = vector.broadcast %cst_12 : f32 to vector<8x32xf32>
    %51 = arith.select %41, %49, %50 : vector<8x32xi1>, vector<8x32xf32>
    %52 = vector.shape_cast %51 : vector<8x32xf32> to vector<1x8x32xf32>
    %cst_13 = arith.constant dense<0.000000e+00> : vector<1xf32>
    %53 = vector.multi_reduction <add>, %52, %cst_13 [1, 2] : vector<1x8x32xf32> to vector<1xf32>
    %54 = vector.shape_cast %53 : vector<1xf32> to vector<1x1x1xf32>
    %55 = vector.extract %54[0, 0, 0] : f32 from vector<1x1x1xf32>
    %56 = arith.subf %48, %55 : f32
    %c0_14 = arith.constant 0 : index
    %c0_15 = arith.constant 0 : index
    %57 = memref.load %arg1[%c0_14, %c0_15] : memref<1x1xf32, #tpu.memory_space<smem>>
    %58 = arith.mulf %57, %38 : f32
    %59 = arith.addf %56, %58 : f32
    %cst_16 = arith.constant 6.250000e-02 : f32
    %60 = arith.mulf %59, %cst_16 : f32
    %61 = vector.broadcast %60 : f32 to vector<1x8x128xf32>
    %c0_17 = arith.constant 0 : index
    %c0_18 = arith.constant 0 : index
    %c0_19 = arith.constant 0 : index
    %62 = vector.load %arg5[%c0_17, %c0_18, %c0_19] : memref<1x8x128xf32, #tpu.memory_space<vmem>>, vector<1x8x128xf32>
    tpu.vector_store %arg5[%c0_17, %c0_18, %c0_19], %61 {strides = array<i32>} : memref<1x8x128xf32, #tpu.memory_space<vmem>>, vector<1x8x128xf32>,
    return
  }
  func.func @transform_0(%arg0: i32) -> (i32, i32) {
    %c0_i32 = arith.constant 0 : i32
    %c0_i32_0 = arith.constant 0 : i32
    %c0_i32_1 = arith.constant 0 : i32
    return %c0_i32, %c0_i32_0 : i32, i32
  }
  func.func @transform_1(%arg0: i32) -> (i32, i32) {
    %c0_i32 = arith.constant 0 : i32
    %c0_i32_0 = arith.constant 0 : i32
    return %arg0, %c0_i32 : i32, i32
  }
  func.func @transform_2(%arg0: i32) -> (i32, i32) {
    %c0_i32 = arith.constant 0 : i32
    %c0_i32_0 = arith.constant 0 : i32
    return %arg0, %c0_i32 : i32, i32
  }
  func.func @transform_3(%arg0: i32) -> (i32, i32) {
    %c0_i32 = arith.constant 0 : i32
    %c0_i32_0 = arith.constant 0 : i32
    return %arg0, %c0_i32 : i32, i32
  }
  func.func @transform_4(%arg0: i32) -> (i32, i32, i32) {
    %c0_i32 = arith.constant 0 : i32
    %c0_i32_0 = arith.constant 0 : i32
    %c0_i32_1 = arith.constant 0 : i32
    return %arg0, %c0_i32, %c0_i32_0 : i32, i32, i32
  }
}

</mosaic_0001>

<llo_original>
// kernel: tpu_custom_call.1
$region0: #{tpu_custom_call.1}
  #allocation0 [shape = 'u32[]', space=smem, size = 0x4, offset = 0x4, fixed_abs, tag = 'smem constant byte address 0x4 - core index']
  #allocation1 [shape = 'u32[144,128]{1,0:T(1,128)}', space=vmem, size = 0x12000, scoped, tag = 'internal scratch']
  #allocation2 [shape = 'f32[1,1]{1,0:T(1,128)S(6)}', space=smem, size = 0x200, scoped, tag = 'scoped memory for tpu_custom_call.1']
  %s0 = inlined_call_operand.<no memory space> [shape: f32[1,1], index: 0, kind: input, shape index: {}]
  %s1 = inlined_call_operand.vmem [shape: f32[8,32], index: 1, kind: input, shape index: {}]
  %s2 = inlined_call_operand.hbm [shape: f32[8,32], index: 2, kind: input, shape index: {}]
  %s3 = inlined_call_operand.vmem [shape: s32[8,1], index: 3, kind: input, shape index: {}]
  %s4 = inlined_call_operand.hbm [shape: f32[1,8,128], index: 4, kind: output, shape index: {}]
  %s5 = sld [smem:[#allocation0]]
  $region30: #{tpu_custom_call.1} parent=0
    _
  %s7 = ssub.s32 1, %s5
  %s8 = scalar_select 0, %s7, %s5
  %9 = sst [smem:[#allocation2]] %s0
  $region1: #{tpu_custom_call.1} parent=0
    #allocation3 [shape = 'u8[4096]{0}', space=vmem, size = 0x1000, scoped, tag = 'input window, operand 2, single buffered']
    #allocation4 [shape = 's32[1]{0}', space=sflag, size = 0x4, scoped, tag = 'scoped memory for tpu_custom_call.1']
    #allocation5 [shape = 's32[1]{0}', space=sflag, size = 0x4, scoped, tag = 'scoped memory for tpu_custom_call.1']
    #allocation6 [shape = 'u8[4096]{0}', space=vmem, size = 0x1000, scoped, tag = 'output window, operand 0, single buffered']
    %10 = vsyncpa [#allocation4], 0
    %11 = vsyncpa [#allocation5], 0
    // Predicated region
    $region2: #{tpu_custom_call.1} parent=1 // pred_check
      _
    $region3: #{tpu_custom_call.1} parent=1 // pred_check_branch
      %13 = sbr.rel (0) target = $region5
    $region4: #{tpu_custom_call.1} parent=1 // pred_region
      _
    $region5: #{tpu_custom_call.1} parent=1 // pred_fallthru
      _
    // Predicated region
    $region6: #{tpu_custom_call.1} parent=1 // pred_check
      _
    $region7: #{tpu_custom_call.1} parent=1 // pred_check_branch
      %15 = sbr.rel (0) target = $region9
    $region8: #{tpu_custom_call.1} parent=1 // pred_region
      _
    $region9: #{tpu_custom_call.1} parent=1 // pred_fallthru
      _
    // Predicated region
    $region10: #{tpu_custom_call.1} parent=1 // pred_check
      _
    $region11: #{tpu_custom_call.1} parent=1 // pred_check_branch
      %17 = sbr.rel (0) target = $region13
    $region12: #{tpu_custom_call.1} parent=1 // pred_region
      %s19 = ssub.s32 128, 128
      %20 = vsyncadd [#allocation4], %s19
      %s22 = sshll.u32 [#allocation3], 4
      %s23 = int_to_ptr.vmem [resolvable:$true] %s22
      %25 = dma.hbm_to_vmem [thread:$0]  %s2, 128, %s23, [#allocation4]
    $region13: #{tpu_custom_call.1} parent=1 // pred_fallthru
      _
    // Predicated region
    $region14: #{tpu_custom_call.1} parent=1 // pred_check
      _
    $region15: #{tpu_custom_call.1} parent=1 // pred_check_branch
      %27 = sbr.rel (0) target = $region17
    $region16: #{tpu_custom_call.1} parent=1 // pred_region
      _
    $region17: #{tpu_custom_call.1} parent=1 // pred_fallthru
      _
    // Predicated region
    $region18: #{tpu_custom_call.1} parent=1 // pred_check
      _
    $region19: #{tpu_custom_call.1} parent=1 // pred_check_branch
      %29 = sbr.rel (0) target = $region21
    $region20: #{tpu_custom_call.1} parent=1 // pred_region
      %30 = dma.done [#allocation4], 128
    $region21: #{tpu_custom_call.1} parent=1 // pred_fallthru
      _
    %v31 = vld [vmem:[%s1] sm:$0xff]
    %v32 = vld [vmem:[#allocation3] sm:$0xff]
    %v33 = vld [vmem:[%s3] sm:$0xff]
    %vm34 = vcmask 261120
    %v35 = vsel %vm34, %v31, -inf
    %36 = vmax.xlane.f32.xlu0 %v35
    %v37 = vpop.xlane.xlu0 %36
    %v38 = vsel %vm34, %v32, -inf
    %39 = vmax.xlane.f32.xlu0 %v38
    %v40 = vpop.xlane.xlu0 %39
    %v41 = vsub.f32 %v31, %v37
    %v42 = vmul.f32 %v41, 1.442695
    %v43 = vpow.pop %v42
    %v44 = vsub.f32 %v32, %v40
    %v45 = vmul.f32 %v44, 1.442695
    %v46 = vpow.pop %v45
    %v47 = vsel %vm34, %v43, 0.0
    %48 = vadd.xlane.f32.xlu0 %v47
    %v49 = vpop.xlane.xlu0 %48
    %v50 = vsel %vm34, %v46, 0.0
    %51 = vadd.xlane.f32.xlu0 %v50
    %v52 = vpop.xlane.xlu0 %51
    %v53 = vlog2.pop %v49
    %v54 = vmul.f32 %v53, 0.6931472
    %v55 = vlog2.pop %v52
    %v56 = vmul.f32 %v55, 0.6931472
    %v57 = vrcp.pop %v52
    %v58 = vmul.f32 1.0, %v57
    %v59 = vmul.f32 %v46, %v58
    %v60 = vrcp.pop %v49
    %v61 = vmul.f32 1.0, %v60
    %v62 = vmul.f32 %v43, %v61
    %v63 = vsub.f32 %v59, %v62
    %v64 = vsub.f32 %v32, %v31
    %v65 = vsub.f32 %v40, %v37
    %v66 = vsub.f32 %v56, %v54
    %v67 = vadd.f32 %v65, %v66
    %v68 = vsub.f32 %v64, %v67
    %v69 = vmul.f32 %v63, %v68
    %v70 = vsel %vm34, %v69, 0.0
    %71 = vadd.xlane.f32.xlu0 %v70
    %v72 = vpop.xlane.xlu0 %71
    %v73 = vrot.slane %v72, 4
    %v74 = vadd.f32 %v72, %v73
    %v75 = vrot.slane %v74, 2
    %v76 = vadd.f32 %v74, %v75
    %v77 = vrot.slane %v76, 1
    %v78 = vadd.f32 %v76, %v77
    %s79 = vtos %v78
    %v80 = vlaneseq
    %v81 = vand.u32 %v80, 127
    %82 = vset.pattern.permute.xlu0 0
    %83 = vperm.xlu0 %82, %v33
    %v84 = vpop.permute.xlu0 %83
    %vm85 = vcmp.eq.s32.totalorder %v81, %v84
    %v86 = vadd.f32 %v37, %v40
    %v87 = vadd.f32 %v86, %v54
    %v88 = vadd.f32 %v87, %v56
    %vm89 = vcmask 7168
    %v90 = vsel %vm89, %v88, 0.0
    %91 = vadd.xlane.f32.xlu0 %v90
    %v92 = vpop.xlane.xlu0 %91
    %v93 = vrot.slane %v92, 4
    %v94 = vadd.f32 %v92, %v93
    %v95 = vrot.slane %v94, 2
    %v96 = vadd.f32 %v94, %v95
    %v97 = vrot.slane %v96, 1
    %v98 = vadd.f32 %v96, %v97
    %s99 = vtos %v98
    %v100 = vadd.f32 %v31, %v32
    %v101 = vsel %vm85, %v100, 0.0
    %v102 = vsel %vm34, %v101, 0.0
    %103 = vadd.xlane.f32.xlu0 %v102
    %v104 = vpop.xlane.xlu0 %103
    %v105 = vrot.slane %v104, 4
    %v106 = vadd.f32 %v104, %v105
    %v107 = vrot.slane %v106, 2
    %v108 = vadd.f32 %v106, %v107
    %v109 = vrot.slane %v108, 1
    %v110 = vadd.f32 %v108, %v109
    %s111 = vtos %v110
    %s112 = ssub.f32 %s99, %s111
    %s113 = sld [smem:[#allocation2]]
    %s114 = smul.f32 %s113, %s79
    %s115 = sadd.f32 %s112, %s114
    %s116 = smul.f32 %s115, 0.0625
    %v117 = vstv %s116
    %118 = vst [vmem:[#allocation6] sm:$0xff] %v117
    // Predicated region
    $region22: #{tpu_custom_call.1} parent=1 // pred_check
      _
    $region23: #{tpu_custom_call.1} parent=1 // pred_check_branch
      %120 = sbr.rel (0) target = $region25
    $region24: #{tpu_custom_call.1} parent=1 // pred_region
      %s122 = ssub.s32 128, 128
      %123 = vsyncadd [#allocation5], %s122
      %s125 = sshll.u32 [#allocation6], 4
      %s126 = int_to_ptr.vmem [resolvable:$true] %s125
      %128 = dma.vmem_to_hbm [thread:$0]  %s126, 128, %s4, [#allocation5]
    $region25: #{tpu_custom_call.1} parent=1 // pred_fallthru
      _
    // Predicated region
    $region26: #{tpu_custom_call.1} parent=1 // pred_check
      _
    $region27: #{tpu_custom_call.1} parent=1 // pred_check_branch
      %130 = sbr.rel (0) target = $region29
    $region28: #{tpu_custom_call.1} parent=1 // pred_region
      %131 = dma.done [#allocation5], 128
    $region29: #{tpu_custom_call.1} parent=1 // pred_fallthru
      _
    %132 = vsyncpa [#allocation4], 1
    %133 = vsyncpa [#allocation5], 1

</llo_original>
